<compile_context>
chip_gen: v7x
topology: tpu7x:2x2x1
jax: 0.10.0
libtpu: 0.0.40
codegen_flags: <defaults>
</compile_context>

<pallas_src>
import numpy as np
import jax
import jax.numpy as jnp
from jax import lax
from jax.experimental import pallas as pl
from jax.experimental.pallas import tpu as pltpu

# Problem sizes (module: ConvTranspose2d(3, 7, 5, stride=3); 8x8 spatial input).
N, CIN, H, W = 2, 3, 8, 8
COUT, K, STRIDE = 7, 5, 3
OH = (H - 1) * STRIDE + K               # 26
OW = (W - 1) * STRIDE + K               # 26
QH = -(-OH // STRIDE)                   # 9 output rows per height phase

# ---- Static tap tables ------------------------------------------------------
# For output row oh = 3*qh + ph the contributing kernel rows are
# kh in {ph, ph+3} (if < K), with input row ih = qh + (ph - kh)//3.
# r0 is the first row of the zero-bracketed input that lines up with qh = 0
# (bracket row 0 / H+1 supply the zeros for out-of-range ih).
_TAPS = []        # per ph: tuple of (tap_index, r0)
_KH_LIST = []     # flat list: kernel row kh per tap index
_ti = 0
for _ph in range(STRIDE):
    _taps = []
    for _kh in range(_ph, K, STRIDE):
        _r0 = 1 - (_kh - _ph) // STRIDE      # kh=ph -> 1 ; kh=ph+3 -> 0
        _taps.append((_ti, _r0))
        _KH_LIST.append(_kh)
        _ti += 1
    _TAPS.append(tuple(_taps))
_TAPS = tuple(_TAPS)
T_TAPS = _ti                                  # 5
_KH_ARR = np.asarray(_KH_LIST, np.int32)

# Width selection tensor: SEL[kw, iw, ow] = 1 iff ow == 3*iw + kw.
_SEL = np.zeros((K, W, OW), np.float32)
for _kw in range(K):
    for _iw in range(W):
        _SEL[_kw, _iw, STRIDE * _iw + _kw] = 1.0


def conv_transpose_tanh_kernel(x_ref, w_ref, b_ref, o_ref):
    # x_ref : (N, CIN, H, W)            raw NCHW input            (VMEM)
    # w_ref : (T_TAPS, CIN*W, COUT*OW)  banded width-conv weights (VMEM)
    # b_ref : (1, COUT*OW)              bias repeated per column  (VMEM)
    # o_ref : (N, STRIDE, QH, COUT*OW)  lane-dense output slab    (VMEM)

    # ---- Stage 1: pack channels along lanes, bracket rows with zeros -------
    x = x_ref[...]                                                  # (N,CIN,H,W)
    rows = jnp.concatenate([x[:, ci] for ci in range(CIN)], axis=-1)  # (N,H,CIN*W)
    zrow = jnp.zeros((N, 1, CIN * W), jnp.float32)
    xp = jnp.concatenate([zrow, rows, zrow], axis=1)                # (N,H+2,CIN*W)

    bias = b_ref[...]                                               # (1, COUT*OW)
    wmats = [w_ref[t] for t in range(T_TAPS)]                       # (CIN*W, COUT*OW)

    # ---- Stage 2: per (batch, phase) <=2 accumulated MXU matmuls -----------
    # slab[n, ph, qh, co*OW + ow] = tanh(bias[co] +
    #     sum_taps sum_{ci,iw} xp[n, r0+qh, ci*W+iw] * Wb[tap, ci*W+iw, co*OW+ow])
    for n in range(N):
        for ph in range(STRIDE):
            acc = None
            for ti, r0 in _TAPS[ph]:
                part = jnp.dot(xp[n, r0:r0 + QH, :], wmats[ti],
                               preferred_element_type=jnp.float32)
                acc = part if acc is None else acc + part
            o_ref[n, ph, :, :] = jnp.tanh(acc + bias)


@jax.jit
def model_forward(x_nchw, weight, bias):
    """x_nchw: (N, CIN, H, W); weight: (CIN, COUT, K, K) (PyTorch layout);
    bias: (COUT,).  Returns NCHW (N, COUT, OH, OW) = tanh(conv_transpose(x))."""
    x = x_nchw.astype(jnp.float32)
    w = weight.astype(jnp.float32)
    b = bias.astype(jnp.float32)

    # Banded (Toeplitz) width weights, one (CIN*W, COUT*OW) matrix per tap:
    #   Wb[t, ci*W+iw, co*OW+ow] = W[ci, co, kh_t, ow-3*iw]   (0 <= ow-3*iw < K)
    wsel = w[:, :, _KH_ARR, :]                                   # (CIN,COUT,T,K)
    wb = jnp.einsum("cdtk,kiw->tcidw", wsel, jnp.asarray(_SEL),
                    precision=lax.Precision.HIGHEST)
    wb = wb.reshape(T_TAPS, CIN * W, COUT * OW)
    b2 = jnp.repeat(b, OW).reshape(1, COUT * OW)

    slab = pl.pallas_call(
        conv_transpose_tanh_kernel,
        out_shape=jax.ShapeDtypeStruct((N, STRIDE, QH, COUT * OW), jnp.float32),
        in_specs=[
            pl.BlockSpec(memory_space=pltpu.MemorySpace.VMEM),
            pl.BlockSpec(memory_space=pltpu.MemorySpace.VMEM),
            pl.BlockSpec(memory_space=pltpu.MemorySpace.VMEM),
        ],
        out_specs=pl.BlockSpec(memory_space=pltpu.MemorySpace.VMEM),
    )(x, wb, b2)

    # Layout plumbing only: interleave the stride phases back into OH rows
    # (oh = 3*qh + ph) and drop the one spare row of the ph=2 slab.
    out = slab.reshape(N, STRIDE, QH, COUT, OW)
    out = jnp.transpose(out, (0, 3, 2, 1, 4)).reshape(N, COUT, QH * STRIDE, OW)
    return out[:, :, :OH, :]


def reference_forward(x_nchw, weight, bias):
    """Direct scatter-add reference of ConvTranspose2d + tanh (plain JAX)."""
    x_nhwc = jnp.transpose(x_nchw, (0, 2, 3, 1)).astype(jnp.float32)
    out = jnp.zeros((N, OH, OW, COUT), jnp.float32)
    for kh in range(K):
        for kw in range(K):
            wk = weight[:, :, kh, kw]                            # (CIN, COUT)
            contrib = jnp.einsum("nijc,cd->nijd", x_nhwc, wk,
                                 precision=lax.Precision.HIGHEST)
            out = out.at[:, kh:kh + STRIDE * H:STRIDE,
                         kw:kw + STRIDE * W:STRIDE, :].add(contrib)
    out = jnp.tanh(out + bias.reshape(1, 1, 1, COUT))
    return jnp.transpose(out, (0, 3, 1, 2))


if __name__ == "__main__":
    key = jax.random.PRNGKey(0)
    kx, kwt, kb = jax.random.split(key, 3)

    # Deterministic synthetic parameters (PyTorch ConvTranspose2d shapes).
    fan_in = CIN * K * K
    bound = 1.0 / (fan_in ** 0.5)
    weight = jax.random.uniform(kwt, (CIN, COUT, K, K), jnp.float32, -bound, bound)
    bias = jax.random.uniform(kb, (COUT,), jnp.float32, -bound, bound)

    # Input (NCHW, like the PyTorch module's x1 blob).
    x = jax.random.uniform(kx, (N, CIN, H, W), jnp.float32)

    out = jax.block_until_ready(model_forward(x, weight, bias))
    ref = reference_forward(x, weight, bias)

    assert out.shape == (N, COUT, OH, OW), out.shape
    # Tolerance covers possible bf16-pass rounding of the f32 MXU matmul and
    # sum reassociation; any structural/indexing error is >= ~2e-2 here.
    err = float(jnp.max(jnp.abs(out - ref)))
    assert err < 5e-3, f"mismatch vs reference: max|err|={err}"

    print("KERNEL_OK")
</pallas_src>

<mosaic_0001>
module attributes {stable_mosaic.version = 11 : i64} {
  func.func @conv_transpose_tanh_kernel(%arg0: memref<2x3x8x8xf32, #tpu.memory_space<vmem>>, %arg1: memref<5x24x182xf32, #tpu.memory_space<vmem>>, %arg2: memref<1x182xf32, #tpu.memory_space<vmem>>, %arg3: memref<2x3x9x182xf32, #tpu.memory_space<vmem>>) attributes {dimension_semantics = [], scalar_prefetch = 0 : i64, scratch_operands = 0 : i64, tpu.core_type = #tpu.core_type<tc>} {
    %c0 = arith.constant 0 : index
    %c0_0 = arith.constant 0 : index
    %c0_1 = arith.constant 0 : index
    %c0_2 = arith.constant 0 : index
    %0 = vector.load %arg0[%c0, %c0_0, %c0_1, %c0_2] : memref<2x3x8x8xf32, #tpu.memory_space<vmem>>, vector<2x3x8x8xf32>
    %1 = vector.extract_strided_slice %0 {offsets = [0, 0, 0, 0], sizes = [2, 1, 8, 8], strides = [1, 1, 1, 1]} : vector<2x3x8x8xf32> to vector<2x1x8x8xf32>
    %2 = vector.shape_cast %1 : vector<2x1x8x8xf32> to vector<2x8x8xf32>
    %3 = vector.extract_strided_slice %0 {offsets = [0, 1, 0, 0], sizes = [2, 1, 8, 8], strides = [1, 1, 1, 1]} : vector<2x3x8x8xf32> to vector<2x1x8x8xf32>
    %4 = vector.shape_cast %3 : vector<2x1x8x8xf32> to vector<2x8x8xf32>
    %5 = vector.extract_strided_slice %0 {offsets = [0, 2, 0, 0], sizes = [2, 1, 8, 8], strides = [1, 1, 1, 1]} : vector<2x3x8x8xf32> to vector<2x1x8x8xf32>
    %6 = vector.shape_cast %5 : vector<2x1x8x8xf32> to vector<2x8x8xf32>
    %7 = tpu.concatenate %2, %4, %6 in 2 : vector<2x8x8xf32>, vector<2x8x8xf32>, vector<2x8x8xf32> -> vector<2x8x24xf32>
    %cst = arith.constant 0.000000e+00 : f32
    %8 = vector.broadcast %cst : f32 to vector<2x1x24xf32>
    %9 = tpu.concatenate %8, %7, %8 in 1 : vector<2x1x24xf32>, vector<2x8x24xf32>, vector<2x1x24xf32> -> vector<2x10x24xf32>
    %c0_3 = arith.constant 0 : index
    %c0_4 = arith.constant 0 : index
    %10 = vector.load %arg2[%c0_3, %c0_4] : memref<1x182xf32, #tpu.memory_space<vmem>>, vector<1x182xf32>
    %c0_5 = arith.constant 0 : index
    %c0_6 = arith.constant 0 : index
    %c0_7 = arith.constant 0 : index
    %11 = vector.load %arg1[%c0_5, %c0_6, %c0_7] : memref<5x24x182xf32, #tpu.memory_space<vmem>>, vector<1x24x182xf32>
    %12 = vector.shape_cast %11 : vector<1x24x182xf32> to vector<24x182xf32>
    %c1 = arith.constant 1 : index
    %c0_8 = arith.constant 0 : index
    %c0_9 = arith.constant 0 : index
    %13 = vector.load %arg1[%c1, %c0_8, %c0_9] : memref<5x24x182xf32, #tpu.memory_space<vmem>>, vector<1x24x182xf32>
    %14 = vector.shape_cast %13 : vector<1x24x182xf32> to vector<24x182xf32>
    %c2 = arith.constant 2 : index
    %c0_10 = arith.constant 0 : index
    %c0_11 = arith.constant 0 : index
    %15 = vector.load %arg1[%c2, %c0_10, %c0_11] : memref<5x24x182xf32, #tpu.memory_space<vmem>>, vector<1x24x182xf32>
    %16 = vector.shape_cast %15 : vector<1x24x182xf32> to vector<24x182xf32>
    %c3 = arith.constant 3 : index
    %c0_12 = arith.constant 0 : index
    %c0_13 = arith.constant 0 : index
    %17 = vector.load %arg1[%c3, %c0_12, %c0_13] : memref<5x24x182xf32, #tpu.memory_space<vmem>>, vector<1x24x182xf32>
    %18 = vector.shape_cast %17 : vector<1x24x182xf32> to vector<24x182xf32>
    %c4 = arith.constant 4 : index
    %c0_14 = arith.constant 0 : index
    %c0_15 = arith.constant 0 : index
    %19 = vector.load %arg1[%c4, %c0_14, %c0_15] : memref<5x24x182xf32, #tpu.memory_space<vmem>>, vector<1x24x182xf32>
    %20 = vector.shape_cast %19 : vector<1x24x182xf32> to vector<24x182xf32>
    %21 = vector.extract_strided_slice %9 {offsets = [0, 1, 0], sizes = [1, 9, 24], strides = [1, 1, 1]} : vector<2x10x24xf32> to vector<1x9x24xf32>
    %22 = vector.shape_cast %21 : vector<1x9x24xf32> to vector<9x24xf32>
    %cst_16 = arith.constant dense<0.000000e+00> : vector<9x182xf32>
    %23 = tpu.matmul %22, %12, %cst_16 {dimension_numbers = #tpu.dot_dimension_numbers<[1], [0], [0], [1], [0, 0, 1, 1], [], []>} : vector<9x24xf32>, vector<24x182xf32>, vector<9x182xf32> -> vector<9x182xf32>
    %24 = vector.extract_strided_slice %9 {offsets = [0, 0, 0], sizes = [1, 9, 24], strides = [1, 1, 1]} : vector<2x10x24xf32> to vector<1x9x24xf32>
    %25 = vector.shape_cast %24 : vector<1x9x24xf32> to vector<9x24xf32>
    %cst_17 = arith.constant dense<0.000000e+00> : vector<9x182xf32>
    %26 = tpu.matmul %25, %14, %cst_17 {dimension_numbers = #tpu.dot_dimension_numbers<[1], [0], [0], [1], [0, 0, 1, 1], [], []>} : vector<9x24xf32>, vector<24x182xf32>, vector<9x182xf32> -> vector<9x182xf32>
    %27 = arith.addf %23, %26 : vector<9x182xf32>
    %28 = vector.broadcast %10 : vector<1x182xf32> to vector<9x182xf32>
    %29 = arith.addf %27, %28 : vector<9x182xf32>
    %30 = math.tanh %29 : vector<9x182xf32>
    %c0_18 = arith.constant 0 : index
    %c0_19 = arith.constant 0 : index
    %c0_20 = arith.constant 0 : index
    %c0_21 = arith.constant 0 : index
    %31 = vector.load %arg3[%c0_18, %c0_19, %c0_20, %c0_21] : memref<2x3x9x182xf32, #tpu.memory_space<vmem>>, vector<1x1x9x182xf32>
    %32 = vector.shape_cast %31 : vector<1x1x9x182xf32> to vector<9x182xf32>
    %33 = vector.shape_cast %30 : vector<9x182xf32> to vector<1x1x9x182xf32>
    tpu.vector_store %arg3[%c0_18, %c0_19, %c0_20, %c0_21], %33 {strides = array<i32>} : memref<2x3x9x182xf32, #tpu.memory_space<vmem>>, vector<1x1x9x182xf32>,
    %34 = vector.extract_strided_slice %9 {offsets = [0, 1, 0], sizes = [1, 9, 24], strides = [1, 1, 1]} : vector<2x10x24xf32> to vector<1x9x24xf32>
    %35 = vector.shape_cast %34 : vector<1x9x24xf32> to vector<9x24xf32>
    %cst_22 = arith.constant dense<0.000000e+00> : vector<9x182xf32>
    %36 = tpu.matmul %35, %16, %cst_22 {dimension_numbers = #tpu.dot_dimension_numbers<[1], [0], [0], [1], [0, 0, 1, 1], [], []>} : vector<9x24xf32>, vector<24x182xf32>, vector<9x182xf32> -> vector<9x182xf32>
    %37 = vector.extract_strided_slice %9 {offsets = [0, 0, 0], sizes = [1, 9, 24], strides = [1, 1, 1]} : vector<2x10x24xf32> to vector<1x9x24xf32>
    %38 = vector.shape_cast %37 : vector<1x9x24xf32> to vector<9x24xf32>
    %cst_23 = arith.constant dense<0.000000e+00> : vector<9x182xf32>
    %39 = tpu.matmul %38, %18, %cst_23 {dimension_numbers = #tpu.dot_dimension_numbers<[1], [0], [0], [1], [0, 0, 1, 1], [], []>} : vector<9x24xf32>, vector<24x182xf32>, vector<9x182xf32> -> vector<9x182xf32>
    %40 = arith.addf %36, %39 : vector<9x182xf32>
    %41 = vector.broadcast %10 : vector<1x182xf32> to vector<9x182xf32>
    %42 = arith.addf %40, %41 : vector<9x182xf32>
    %43 = math.tanh %42 : vector<9x182xf32>
    %c0_24 = arith.constant 0 : index
    %c1_25 = arith.constant 1 : index
    %c0_26 = arith.constant 0 : index
    %c0_27 = arith.constant 0 : index
    %44 = vector.load %arg3[%c0_24, %c1_25, %c0_26, %c0_27] : memref<2x3x9x182xf32, #tpu.memory_space<vmem>>, vector<1x1x9x182xf32>
    %45 = vector.shape_cast %44 : vector<1x1x9x182xf32> to vector<9x182xf32>
    %46 = vector.shape_cast %43 : vector<9x182xf32> to vector<1x1x9x182xf32>
    tpu.vector_store %arg3[%c0_24, %c1_25, %c0_26, %c0_27], %46 {strides = array<i32>} : memref<2x3x9x182xf32, #tpu.memory_space<vmem>>, vector<1x1x9x182xf32>,
    %47 = vector.extract_strided_slice %9 {offsets = [0, 1, 0], sizes = [1, 9, 24], strides = [1, 1, 1]} : vector<2x10x24xf32> to vector<1x9x24xf32>
    %48 = vector.shape_cast %47 : vector<1x9x24xf32> to vector<9x24xf32>
    %cst_28 = arith.constant dense<0.000000e+00> : vector<9x182xf32>
    %49 = tpu.matmul %48, %20, %cst_28 {dimension_numbers = #tpu.dot_dimension_numbers<[1], [0], [0], [1], [0, 0, 1, 1], [], []>} : vector<9x24xf32>, vector<24x182xf32>, vector<9x182xf32> -> vector<9x182xf32>
    %50 = vector.broadcast %10 : vector<1x182xf32> to vector<9x182xf32>
    %51 = arith.addf %49, %50 : vector<9x182xf32>
    %52 = math.tanh %51 : vector<9x182xf32>
    %c0_29 = arith.constant 0 : index
    %c2_30 = arith.constant 2 : index
    %c0_31 = arith.constant 0 : index
    %c0_32 = arith.constant 0 : index
    %53 = vector.load %arg3[%c0_29, %c2_30, %c0_31, %c0_32] : memref<2x3x9x182xf32, #tpu.memory_space<vmem>>, vector<1x1x9x182xf32>
    %54 = vector.shape_cast %53 : vector<1x1x9x182xf32> to vector<9x182xf32>
    %55 = vector.shape_cast %52 : vector<9x182xf32> to vector<1x1x9x182xf32>
    tpu.vector_store %arg3[%c0_29, %c2_30, %c0_31, %c0_32], %55 {strides = array<i32>} : memref<2x3x9x182xf32, #tpu.memory_space<vmem>>, vector<1x1x9x182xf32>,
    %56 = vector.extract_strided_slice %9 {offsets = [1, 1, 0], sizes = [1, 9, 24], strides = [1, 1, 1]} : vector<2x10x24xf32> to vector<1x9x24xf32>
    %57 = vector.shape_cast %56 : vector<1x9x24xf32> to vector<9x24xf32>
    %cst_33 = arith.constant dense<0.000000e+00> : vector<9x182xf32>
    %58 = tpu.matmul %57, %12, %cst_33 {dimension_numbers = #tpu.dot_dimension_numbers<[1], [0], [0], [1], [0, 0, 1, 1], [], []>} : vector<9x24xf32>, vector<24x182xf32>, vector<9x182xf32> -> vector<9x182xf32>
    %59 = vector.extract_strided_slice %9 {offsets = [1, 0, 0], sizes = [1, 9, 24], strides = [1, 1, 1]} : vector<2x10x24xf32> to vector<1x9x24xf32>
    %60 = vector.shape_cast %59 : vector<1x9x24xf32> to vector<9x24xf32>
    %cst_34 = arith.constant dense<0.000000e+00> : vector<9x182xf32>
    %61 = tpu.matmul %60, %14, %cst_34 {dimension_numbers = #tpu.dot_dimension_numbers<[1], [0], [0], [1], [0, 0, 1, 1], [], []>} : vector<9x24xf32>, vector<24x182xf32>, vector<9x182xf32> -> vector<9x182xf32>
    %62 = arith.addf %58, %61 : vector<9x182xf32>
    %63 = vector.broadcast %10 : vector<1x182xf32> to vector<9x182xf32>
    %64 = arith.addf %62, %63 : vector<9x182xf32>
    %65 = math.tanh %64 : vector<9x182xf32>
    %c1_35 = arith.constant 1 : index
    %c0_36 = arith.constant 0 : index
    %c0_37 = arith.constant 0 : index
    %c0_38 = arith.constant 0 : index
    %66 = vector.load %arg3[%c1_35, %c0_36, %c0_37, %c0_38] : memref<2x3x9x182xf32, #tpu.memory_space<vmem>>, vector<1x1x9x182xf32>
    %67 = vector.shape_cast %66 : vector<1x1x9x182xf32> to vector<9x182xf32>
    %68 = vector.shape_cast %65 : vector<9x182xf32> to vector<1x1x9x182xf32>
    tpu.vector_store %arg3[%c1_35, %c0_36, %c0_37, %c0_38], %68 {strides = array<i32>} : memref<2x3x9x182xf32, #tpu.memory_space<vmem>>, vector<1x1x9x182xf32>,
    %69 = vector.extract_strided_slice %9 {offsets = [1, 1, 0], sizes = [1, 9, 24], strides = [1, 1, 1]} : vector<2x10x24xf32> to vector<1x9x24xf32>
    %70 = vector.shape_cast %69 : vector<1x9x24xf32> to vector<9x24xf32>
    %cst_39 = arith.constant dense<0.000000e+00> : vector<9x182xf32>
    %71 = tpu.matmul %70, %16, %cst_39 {dimension_numbers = #tpu.dot_dimension_numbers<[1], [0], [0], [1], [0, 0, 1, 1], [], []>} : vector<9x24xf32>, vector<24x182xf32>, vector<9x182xf32> -> vector<9x182xf32>
    %72 = vector.extract_strided_slice %9 {offsets = [1, 0, 0], sizes = [1, 9, 24], strides = [1, 1, 1]} : vector<2x10x24xf32> to vector<1x9x24xf32>
    %73 = vector.shape_cast %72 : vector<1x9x24xf32> to vector<9x24xf32>
    %cst_40 = arith.constant dense<0.000000e+00> : vector<9x182xf32>
    %74 = tpu.matmul %73, %18, %cst_40 {dimension_numbers = #tpu.dot_dimension_numbers<[1], [0], [0], [1], [0, 0, 1, 1], [], []>} : vector<9x24xf32>, vector<24x182xf32>, vector<9x182xf32> -> vector<9x182xf32>
    %75 = arith.addf %71, %74 : vector<9x182xf32>
    %76 = vector.broadcast %10 : vector<1x182xf32> to vector<9x182xf32>
    %77 = arith.addf %75, %76 : vector<9x182xf32>
    %78 = math.tanh %77 : vector<9x182xf32>
    %c1_41 = arith.constant 1 : index
    %c1_42 = arith.constant 1 : index
    %c0_43 = arith.constant 0 : index
    %c0_44 = arith.constant 0 : index
    %79 = vector.load %arg3[%c1_41, %c1_42, %c0_43, %c0_44] : memref<2x3x9x182xf32, #tpu.memory_space<vmem>>, vector<1x1x9x182xf32>
    %80 = vector.shape_cast %79 : vector<1x1x9x182xf32> to vector<9x182xf32>
    %81 = vector.shape_cast %78 : vector<9x182xf32> to vector<1x1x9x182xf32>
    tpu.vector_store %arg3[%c1_41, %c1_42, %c0_43, %c0_44], %81 {strides = array<i32>} : memref<2x3x9x182xf32, #tpu.memory_space<vmem>>, vector<1x1x9x182xf32>,
    %82 = vector.extract_strided_slice %9 {offsets = [1, 1, 0], sizes = [1, 9, 24], strides = [1, 1, 1]} : vector<2x10x24xf32> to vector<1x9x24xf32>
    %83 = vector.shape_cast %82 : vector<1x9x24xf32> to vector<9x24xf32>
    %cst_45 = arith.constant dense<0.000000e+00> : vector<9x182xf32>
    %84 = tpu.matmul %83, %20, %cst_45 {dimension_numbers = #tpu.dot_dimension_numbers<[1], [0], [0], [1], [0, 0, 1, 1], [], []>} : vector<9x24xf32>, vector<24x182xf32>, vector<9x182xf32> -> vector<9x182xf32>
    %85 = vector.broadcast %10 : vector<1x182xf32> to vector<9x182xf32>
    %86 = arith.addf %84, %85 : vector<9x182xf32>
    %87 = math.tanh %86 : vector<9x182xf32>
    %c1_46 = arith.constant 1 : index
    %c2_47 = arith.constant 2 : index
    %c0_48 = arith.constant 0 : index
    %c0_49 = arith.constant 0 : index
    %88 = vector.load %arg3[%c1_46, %c2_47, %c0_48, %c0_49] : memref<2x3x9x182xf32, #tpu.memory_space<vmem>>, vector<1x1x9x182xf32>
    %89 = vector.shape_cast %88 : vector<1x1x9x182xf32> to vector<9x182xf32>
    %90 = vector.shape_cast %87 : vector<9x182xf32> to vector<1x1x9x182xf32>
    tpu.vector_store %arg3[%c1_46, %c2_47, %c0_48, %c0_49], %90 {strides = array<i32>} : memref<2x3x9x182xf32, #tpu.memory_space<vmem>>, vector<1x1x9x182xf32>,
    return
  }
}

</mosaic_0001>

<llo_original>
// kernel: model_forward.1
$region0: #{model_forward.1}
  #allocation0 [shape = 'u32[]', space=smem, size = 0x4, offset = 0x4, fixed_abs, tag = 'smem constant byte address 0x4 - core index']
  #allocation1 [shape = 'u32[144,128]{1,0:T(1,128)}', space=vmem, size = 0x12000, scoped, tag = 'internal scratch']
  %s0 = inlined_call_operand.vmem [shape: f32[2,3,8,8], index: 0, kind: input, shape index: {}]
  %s1 = inlined_call_operand.vmem [shape: f32[5,24,182], index: 1, kind: input, shape index: {}]
  %s2 = inlined_call_operand.vmem [shape: f32[1,182], index: 2, kind: input, shape index: {}]
  %s3 = inlined_call_operand.vmem [shape: f32[2,3,9,182], index: 3, kind: output, shape index: {}]
  %s4 = sld [smem:[#allocation0]]
  $region22: #{model_forward.1} parent=0
    _
  %s6 = ssub.s32 1, %s4
  %s7 = scalar_select 0, %s6, %s4
  // Predicated region
  $region2: #{model_forward.1} parent=0 // pred_check
    _
  $region3: #{model_forward.1} parent=0 // pred_check_branch
    %9 = sbr.rel (0) target = $region5
  $region4: #{model_forward.1} parent=0 // pred_region
    _
  $region5: #{model_forward.1} parent=0 // pred_fallthru
    _
  // Predicated region
  $region6: #{model_forward.1} parent=0 // pred_check
    _
  $region7: #{model_forward.1} parent=0 // pred_check_branch
    %11 = sbr.rel (0) target = $region9
  $region8: #{model_forward.1} parent=0 // pred_region
    _
  $region9: #{model_forward.1} parent=0 // pred_fallthru
    _
  // Predicated region
  $region10: #{model_forward.1} parent=0 // pred_check
    _
  $region11: #{model_forward.1} parent=0 // pred_check_branch
    %13 = sbr.rel (0) target = $region13
  $region12: #{model_forward.1} parent=0 // pred_region
    _
  $region13: #{model_forward.1} parent=0 // pred_fallthru
    _
  %v14 = vld [vmem:[%s0] sm:$0xff]
  %v15 = vld [vmem:[%s0 + $0x8] sm:$0xff]
  %v16 = vld [vmem:[%s0 + $0x10] sm:$0xff]
  %v17 = vld [vmem:[%s0 + $0x18] sm:$0xff]
  %v18 = vld [vmem:[%s0 + $0x20] sm:$0xff]
  %v19 = vld [vmem:[%s0 + $0x28] sm:$0xff]
  %22 = vrot.lane.b32.xlu0 %v15, 8
  %v23 = vpop.permute.xlu0 %22
  %24 = vrot.lane.b32.xlu0 %v18, 8
  %v25 = vpop.permute.xlu0 %24
  %30 = vrot.lane.b32.xlu0 %v16, 16
  %v31 = vpop.permute.xlu0 %30
  %32 = vrot.lane.b32.xlu0 %v19, 16
  %v33 = vpop.permute.xlu0 %32
  %vm36 = vcmask 64512
  %v37 = vsel %vm36, %v14, %v23
  %v38 = vsel %vm36, %v17, %v25
  %vm39 = vcmask 130048
  %v40 = vsel %vm39, %v37, %v31
  %v41 = vsel %vm39, %v38, %v33
  %v44 = vrot.slane %v40, 7
  %v45 = vrot.slane %v41, 7
  %vm48 = vcmask 1040384
  %v49 = vsel %vm48, 0.0, %v44
  %v50 = vsel %vm48, 0.0, %v45
  %v51 = vsel %vm48, %v44, 0.0
  %v52 = vsel %vm48, %v45, 0.0
  %v53 = vld [vmem:[%s2] sm:$0x3]
  %v54 = vld [vmem:[%s1] sm:$0xff]
  %v55 = vld [vmem:[%s1 + $0x8] sm:$0xff]
  %v56 = vld [vmem:[%s1 + $0x10] sm:$0xff]
  %v57 = vld [vmem:[%s1 + $0x18] sm:$0xff]
  %v58 = vld [vmem:[%s1 + $0x20] sm:$0xff]
  %v59 = vld [vmem:[%s1 + $0x28] sm:$0xff]
  %s60 = scalar_lea.vmem %s1, 48
  %v61 = vld [vmem:[%s60] sm:$0xff]
  %v62 = vld [vmem:[%s60 + $0x8] sm:$0xff]
  %v63 = vld [vmem:[%s60 + $0x10] sm:$0xff]
  %v64 = vld [vmem:[%s60 + $0x18] sm:$0xff]
  %v65 = vld [vmem:[%s60 + $0x20] sm:$0xff]
  %v66 = vld [vmem:[%s60 + $0x28] sm:$0xff]
  %s67 = scalar_lea.vmem %s1, 96
  %v68 = vld [vmem:[%s67] sm:$0xff]
  %v69 = vld [vmem:[%s67 + $0x8] sm:$0xff]
  %v70 = vld [vmem:[%s67 + $0x10] sm:$0xff]
  %v71 = vld [vmem:[%s67 + $0x18] sm:$0xff]
  %v72 = vld [vmem:[%s67 + $0x20] sm:$0xff]
  %v73 = vld [vmem:[%s67 + $0x28] sm:$0xff]
  %s74 = scalar_lea.vmem %s1, 144
  %v75 = vld [vmem:[%s74] sm:$0xff]
  %v76 = vld [vmem:[%s74 + $0x8] sm:$0xff]
  %v77 = vld [vmem:[%s74 + $0x10] sm:$0xff]
  %v78 = vld [vmem:[%s74 + $0x18] sm:$0xff]
  %v79 = vld [vmem:[%s74 + $0x20] sm:$0xff]
  %v80 = vld [vmem:[%s74 + $0x28] sm:$0xff]
  %s81 = scalar_lea.vmem %s1, 192
  %v82 = vld [vmem:[%s81] sm:$0xff]
  %v83 = vld [vmem:[%s81 + $0x8] sm:$0xff]
  %v84 = vld [vmem:[%s81 + $0x10] sm:$0xff]
  %v85 = vld [vmem:[%s81 + $0x18] sm:$0xff]
  %v86 = vld [vmem:[%s81 + $0x20] sm:$0xff]
  %v87 = vld [vmem:[%s81 + $0x28] sm:$0xff]
  %vm88 = vcmask 195584
  %v90 = vsel %vm88, %v49, 0
  %v93 = vsel %vm88, %v51, 0
  %95 = vmatprep.subr.mxu0 %v62
  %96 = vmatpush1.msra.mxu0 %v61
  %97 = vmatprep.subr.mxu0 %v64
  %98 = vmatpush1.msra.mxu0 %v63
  %99 = vmatprep.subr.mxu0 %v66
  %100 = vmatpush1.msra.mxu0 %v65
  %101 = vmatprep.subr.mxu0 0.0
  %102 = vmatpush1.msra.mxu0 0.0
  %103 = vmatprep.subr.mxu0 0.0
  %104 = vmatpush1.msra.mxu0 0.0
  %105 = vmatprep.subr.mxu0 0.0
  %106 = vmatpush1.msra.mxu0 0.0
  %107 = vmatprep.subr.mxu0 0.0
  %108 = vmatpush1.msra.mxu0 0.0
  %109 = vmatprep.subr.mxu0 0.0
  %110 = vmatpush1.msra.mxu0 0.0
  %111 = vmatprep.subr.mxu0 0.0
  %112 = vmatpush1.msra.mxu0 0.0
  %113 = vmatprep.subr.mxu0 0.0
  %114 = vmatpush1.msra.mxu0 0.0
  %115 = vmatprep.subr.mxu0 0.0
  %116 = vmatpush1.msra.mxu0 0.0
  %117 = vmatprep.subr.mxu0 0.0
  %118 = vmatpush1.msra.mxu0 0.0
  %119 = vmatprep.subr.mxu0 0.0
  %120 = vmatpush1.msra.mxu0 0.0
  %121 = vmatprep.subr.mxu0 0.0
  %122 = vmatpush1.msra.mxu0 0.0
  %123 = vmatprep.subr.mxu0 0.0
  %124 = vmatpush1.msra.mxu0 0.0
  %125 = vmatprep.subr.mxu0 0.0
  %126 = vmatpush1.msra.mxu0 0.0
  %127 = vmatprep.subr.mxu0 0.0
  %128 = vmatpush1.msra.mxu0 0.0
  %129 = vmatprep.subr.mxu0 0.0
  %130 = vmatpush1.msra.mxu0 0.0
  %131 = vmatprep.subr.mxu0 0.0
  %132 = vmatpush1.msra.mxu0 0.0
  %133 = vmatprep.subr.mxu0 0.0
  %134 = vmatpush1.msra.mxu0 0.0
  %135 = vmatprep.subr.mxu0 0.0
  %136 = vmatpush1.msra.mxu0 0.0
  %137 = vmatprep.subr.mxu0 0.0
  %138 = vmatpush1.msra.mxu0 0.0
  %139 = vmatprep.subr.mxu0 0.0
  %140 = vmatpush1.msra.mxu0 0.0
  %141 = vmatprep.subr.mxu0 0.0
  %142 = vmatpush1.msra.mxu0 0.0
  %143 = vmatprep.subr.mxu0 0.0
  %144 = vmatpush1.msra.mxu0 0.0
  %145 = vmatprep.subr.mxu0 0.0
  %146 = vmatpush1.msra.mxu0 0.0
  %147 = vmatprep.subr.mxu0 0.0
  %148 = vmatpush1.msra.mxu0 0.0
  %149 = vmatprep.subr.mxu0 0.0
  %150 = vmatpush1.msra.mxu0 0.0
  %151 = vmatprep.subr.mxu0 0.0
  %152 = vmatpush1.msra.mxu0 0.0
  %153 = vmatprep.subr.mxu0 0.0
  %154 = vmatpush1.msra.mxu0 0.0
  %155 = vmatprep.subr.mxu0 0.0
  %156 = vmatpush1.msra.mxu0 0.0
  %157 = vmatprep.subr.mxu0 0.0
  %158 = vmatpush1.msra.mxu0 0.0
  %159 = vmatprep.mubr.f32.mxu0 0.0
  %160 = vmatmul.mubr.f32.gmra.mrb[0].mxu0 %v90
  %v161 = vpop.f32.mrb[0].mxu0
  %v162 = vadd.f32 0.0, %v161
  %v163 = vpop.f32.mrb[0].mxu0
  %v164 = vadd.f32 0.0, %v163
  %165 = vmatprep.mubr.f32.mxu0 0.0
  %166 = vmatmul.mubr.f32.gmra.mrb[0].mxu0 %v93
  %v167 = vpop.f32.mrb[0].mxu0
  %v168 = vadd.f32 0.0, %v167
  %v169 = vpop.f32.mrb[0].mxu0
  %v170 = vadd.f32 0.0, %v169
  %171 = vdwg.mxu0
  %vm172 = vcmask 1046528
  %v173 = vrot.slane %v49, 1
  %v174 = vrot.slane %v51, 1
  %v175 = vsel %vm172, %v173, %v174
  %v176 = vsel %vm88, %v175, 0
  %v178 = vsel %vm88, %v174, 0
  %180 = vmatprep.subr.mxu0 %v55
  %181 = vmatpush1.msra.mxu0 %v54
  %182 = vmatprep.subr.mxu0 %v57
  %183 = vmatpush1.msra.mxu0 %v56
  %184 = vmatprep.subr.mxu0 %v59
  %185 = vmatpush1.msra.mxu0 %v58
  %186 = vmatprep.subr.mxu0 0.0
  %187 = vmatpush1.msra.mxu0 0.0
  %188 = vmatprep.subr.mxu0 0.0
  %189 = vmatpush1.msra.mxu0 0.0
  %190 = vmatprep.subr.mxu0 0.0
  %191 = vmatpush1.msra.mxu0 0.0
  %192 = vmatprep.subr.mxu0 0.0
  %193 = vmatpush1.msra.mxu0 0.0
  %194 = vmatprep.subr.mxu0 0.0
  %195 = vmatpush1.msra.mxu0 0.0
  %196 = vmatprep.subr.mxu0 0.0
  %197 = vmatpush1.msra.mxu0 0.0
  %198 = vmatprep.subr.mxu0 0.0
  %199 = vmatpush1.msra.mxu0 0.0
  %200 = vmatprep.subr.mxu0 0.0
  %201 = vmatpush1.msra.mxu0 0.0
  %202 = vmatprep.subr.mxu0 0.0
  %203 = vmatpush1.msra.mxu0 0.0
  %204 = vmatprep.subr.mxu0 0.0
  %205 = vmatpush1.msra.mxu0 0.0
  %206 = vmatprep.subr.mxu0 0.0
  %207 = vmatpush1.msra.mxu0 0.0
  %208 = vmatprep.subr.mxu0 0.0
  %209 = vmatpush1.msra.mxu0 0.0
  %210 = vmatprep.subr.mxu0 0.0
  %211 = vmatpush1.msra.mxu0 0.0
  %212 = vmatprep.subr.mxu0 0.0
  %213 = vmatpush1.msra.mxu0 0.0
  %214 = vmatprep.subr.mxu0 0.0
  %215 = vmatpush1.msra.mxu0 0.0
  %216 = vmatprep.subr.mxu0 0.0
  %217 = vmatpush1.msra.mxu0 0.0
  %218 = vmatprep.subr.mxu0 0.0
  %219 = vmatpush1.msra.mxu0 0.0
  %220 = vmatprep.subr.mxu0 0.0
  %221 = vmatpush1.msra.mxu0 0.0
  %222 = vmatprep.subr.mxu0 0.0
  %223 = vmatpush1.msra.mxu0 0.0
  %224 = vmatprep.subr.mxu0 0.0
  %225 = vmatpush1.msra.mxu0 0.0
  %226 = vmatprep.subr.mxu0 0.0
  %227 = vmatpush1.msra.mxu0 0.0
  %228 = vmatprep.subr.mxu0 0.0
  %229 = vmatpush1.msra.mxu0 0.0
  %230 = vmatprep.subr.mxu0 0.0
  %231 = vmatpush1.msra.mxu0 0.0
  %232 = vmatprep.subr.mxu0 0.0
  %233 = vmatpush1.msra.mxu0 0.0
  %234 = vmatprep.subr.mxu0 0.0
  %235 = vmatpush1.msra.mxu0 0.0
  %236 = vmatprep.subr.mxu0 0.0
  %237 = vmatpush1.msra.mxu0 0.0
  %238 = vmatprep.subr.mxu0 0.0
  %239 = vmatpush1.msra.mxu0 0.0
  %240 = vmatprep.subr.mxu0 0.0
  %241 = vmatpush1.msra.mxu0 0.0
  %242 = vmatprep.subr.mxu0 0.0
  %243 = vmatpush1.msra.mxu0 0.0
  %244 = vmatprep.mubr.f32.mxu0 0.0
  %245 = vmatmul.mubr.f32.gmra.mrb[0].mxu0 %v176
  %v246 = vpop.f32.mrb[0].mxu0
  %v247 = vadd.f32 %v162, %v246
  %v248 = vpop.f32.mrb[0].mxu0
  %v249 = vadd.f32 %v164, %v248
  %250 = vmatprep.mubr.f32.mxu0 0.0
  %251 = vmatmul.mubr.f32.gmra.mrb[0].mxu0 %v178
  %v252 = vpop.f32.mrb[0].mxu0
  %v253 = vadd.f32 %v168, %v252
  %v254 = vpop.f32.mrb[0].mxu0
  %v255 = vadd.f32 %v170, %v254
  %256 = vdwg.mxu0
  %v258 = vlaneseq
  %v259 = vshrl.u32 %v258, 7
  %v260 = vsub.s32 0, %v259
  %v261 = vrot.slane %v53, %v260
  %v262 = vlaneseq
  %v263 = vshrl.u32 %v262, 7
  %v264 = vsub.s32 1, %v263
  %v265 = vrot.slane %v53, %v264
  %v268 = vadd.f32 %v247, %v261
  %v269 = vadd.f32 %v249, %v265
  %v270 = vadd.f32 %v253, %v261
  %v271 = vadd.f32 %v255, %v265
  %v272 = vtanh.pop %v268
  %v273 = vtanh.pop %v269
  %v274 = vtanh.pop %v270
  %v275 = vtanh.pop %v271
  %276 = vst [vmem:[%s3] sm:$0xff] %v272
  %vm277 = vcmask 441344
  %278 = vst.msk [vmem:[%s3 + $0x8] sm:$0xff] %vm277, %v273
  %279 = vst [vmem:[%s3 + $0x10] sm:$0x1] %v274
  %vm280 = vcmask 434176
  %281 = vst.msk [vmem:[%s3 + $0x18] sm:$0x1] %vm280, %v275
  %282 = vmatprep.subr.mxu0 %v76
  %283 = vmatpush1.msra.mxu0 %v75
  %284 = vmatprep.subr.mxu0 %v78
  %285 = vmatpush1.msra.mxu0 %v77
  %286 = vmatprep.subr.mxu0 %v80
  %287 = vmatpush1.msra.mxu0 %v79
  %288 = vmatprep.subr.mxu0 0.0
  %289 = vmatpush1.msra.mxu0 0.0
  %290 = vmatprep.subr.mxu0 0.0
  %291 = vmatpush1.msra.mxu0 0.0
  %292 = vmatprep.subr.mxu0 0.0
  %293 = vmatpush1.msra.mxu0 0.0
  %294 = vmatprep.subr.mxu0 0.0
  %295 = vmatpush1.msra.mxu0 0.0
  %296 = vmatprep.subr.mxu0 0.0
  %297 = vmatpush1.msra.mxu0 0.0
  %298 = vmatprep.subr.mxu0 0.0
  %299 = vmatpush1.msra.mxu0 0.0
  %300 = vmatprep.subr.mxu0 0.0
  %301 = vmatpush1.msra.mxu0 0.0
  %302 = vmatprep.subr.mxu0 0.0
  %303 = vmatpush1.msra.mxu0 0.0
  %304 = vmatprep.subr.mxu0 0.0
  %305 = vmatpush1.msra.mxu0 0.0
  %306 = vmatprep.subr.mxu0 0.0
  %307 = vmatpush1.msra.mxu0 0.0
  %308 = vmatprep.subr.mxu0 0.0
  %309 = vmatpush1.msra.mxu0 0.0
  %310 = vmatprep.subr.mxu0 0.0
  %311 = vmatpush1.msra.mxu0 0.0
  %312 = vmatprep.subr.mxu0 0.0
  %313 = vmatpush1.msra.mxu0 0.0
  %314 = vmatprep.subr.mxu0 0.0
  %315 = vmatpush1.msra.mxu0 0.0
  %316 = vmatprep.subr.mxu0 0.0
  %317 = vmatpush1.msra.mxu0 0.0
  %318 = vmatprep.subr.mxu0 0.0
  %319 = vmatpush1.msra.mxu0 0.0
  %320 = vmatprep.subr.mxu0 0.0
  %321 = vmatpush1.msra.mxu0 0.0
  %322 = vmatprep.subr.mxu0 0.0
  %323 = vmatpush1.msra.mxu0 0.0
  %324 = vmatprep.subr.mxu0 0.0
  %325 = vmatpush1.msra.mxu0 0.0
  %326 = vmatprep.subr.mxu0 0.0
  %327 = vmatpush1.msra.mxu0 0.0
  %328 = vmatprep.subr.mxu0 0.0
  %329 = vmatpush1.msra.mxu0 0.0
  %330 = vmatprep.subr.mxu0 0.0
  %331 = vmatpush1.msra.mxu0 0.0
  %332 = vmatprep.subr.mxu0 0.0
  %333 = vmatpush1.msra.mxu0 0.0
  %334 = vmatprep.subr.mxu0 0.0
  %335 = vmatpush1.msra.mxu0 0.0
  %336 = vmatprep.subr.mxu0 0.0
  %337 = vmatpush1.msra.mxu0 0.0
  %338 = vmatprep.subr.mxu0 0.0
  %339 = vmatpush1.msra.mxu0 0.0
  %340 = vmatprep.subr.mxu0 0.0
  %341 = vmatpush1.msra.mxu0 0.0
  %342 = vmatprep.subr.mxu0 0.0
  %343 = vmatpush1.msra.mxu0 0.0
  %344 = vmatprep.subr.mxu0 0.0
  %345 = vmatpush1.msra.mxu0 0.0
  %346 = vmatprep.mubr.f32.mxu0 0.0
  %347 = vmatmul.mubr.f32.gmra.mrb[0].mxu0 %v90
  %v348 = vpop.f32.mrb[0].mxu0
  %v349 = vadd.f32 0.0, %v348
  %v350 = vpop.f32.mrb[0].mxu0
  %v351 = vadd.f32 0.0, %v350
  %352 = vmatprep.mubr.f32.mxu0 0.0
  %353 = vmatmul.mubr.f32.gmra.mrb[0].mxu0 %v93
  %v354 = vpop.f32.mrb[0].mxu0
  %v355 = vadd.f32 0.0, %v354
  %v356 = vpop.f32.mrb[0].mxu0
  %v357 = vadd.f32 0.0, %v356
  %358 = vdwg.mxu0
  %359 = vmatprep.subr.mxu0 %v69
  %360 = vmatpush1.msra.mxu0 %v68
  %361 = vmatprep.subr.mxu0 %v71
  %362 = vmatpush1.msra.mxu0 %v70
  %363 = vmatprep.subr.mxu0 %v73
  %364 = vmatpush1.msra.mxu0 %v72
  %365 = vmatprep.subr.mxu0 0.0
  %366 = vmatpush1.msra.mxu0 0.0
  %367 = vmatprep.subr.mxu0 0.0
  %368 = vmatpush1.msra.mxu0 0.0
  %369 = vmatprep.subr.mxu0 0.0
  %370 = vmatpush1.msra.mxu0 0.0
  %371 = vmatprep.subr.mxu0 0.0
  %372 = vmatpush1.msra.mxu0 0.0
  %373 = vmatprep.subr.mxu0 0.0
  %374 = vmatpush1.msra.mxu0 0.0
  %375 = vmatprep.subr.mxu0 0.0
  %376 = vmatpush1.msra.mxu0 0.0
  %377 = vmatprep.subr.mxu0 0.0
  %378 = vmatpush1.msra.mxu0 0.0
  %379 = vmatprep.subr.mxu0 0.0
  %380 = vmatpush1.msra.mxu0 0.0
  %381 = vmatprep.subr.mxu0 0.0
  %382 = vmatpush1.msra.mxu0 0.0
  %383 = vmatprep.subr.mxu0 0.0
  %384 = vmatpush1.msra.mxu0 0.0
  %385 = vmatprep.subr.mxu0 0.0
  %386 = vmatpush1.msra.mxu0 0.0
  %387 = vmatprep.subr.mxu0 0.0
  %388 = vmatpush1.msra.mxu0 0.0
  %389 = vmatprep.subr.mxu0 0.0
  %390 = vmatpush1.msra.mxu0 0.0
  %391 = vmatprep.subr.mxu0 0.0
  %392 = vmatpush1.msra.mxu0 0.0
  %393 = vmatprep.subr.mxu0 0.0
  %394 = vmatpush1.msra.mxu0 0.0
  %395 = vmatprep.subr.mxu0 0.0
  %396 = vmatpush1.msra.mxu0 0.0
  %397 = vmatprep.subr.mxu0 0.0
  %398 = vmatpush1.msra.mxu0 0.0
  %399 = vmatprep.subr.mxu0 0.0
  %400 = vmatpush1.msra.mxu0 0.0
  %401 = vmatprep.subr.mxu0 0.0
  %402 = vmatpush1.msra.mxu0 0.0
  %403 = vmatprep.subr.mxu0 0.0
  %404 = vmatpush1.msra.mxu0 0.0
  %405 = vmatprep.subr.mxu0 0.0
  %406 = vmatpush1.msra.mxu0 0.0
  %407 = vmatprep.subr.mxu0 0.0
  %408 = vmatpush1.msra.mxu0 0.0
  %409 = vmatprep.subr.mxu0 0.0
  %410 = vmatpush1.msra.mxu0 0.0
  %411 = vmatprep.subr.mxu0 0.0
  %412 = vmatpush1.msra.mxu0 0.0
  %413 = vmatprep.subr.mxu0 0.0
  %414 = vmatpush1.msra.mxu0 0.0
  %415 = vmatprep.subr.mxu0 0.0
  %416 = vmatpush1.msra.mxu0 0.0
  %417 = vmatprep.subr.mxu0 0.0
  %418 = vmatpush1.msra.mxu0 0.0
  %419 = vmatprep.subr.mxu0 0.0
  %420 = vmatpush1.msra.mxu0 0.0
  %421 = vmatprep.subr.mxu0 0.0
  %422 = vmatpush1.msra.mxu0 0.0
  %423 = vmatprep.mubr.f32.mxu0 0.0
  %424 = vmatmul.mubr.f32.gmra.mrb[0].mxu0 %v176
  %v425 = vpop.f32.mrb[0].mxu0
  %v426 = vadd.f32 %v349, %v425
  %v427 = vpop.f32.mrb[0].mxu0
  %v428 = vadd.f32 %v351, %v427
  %429 = vmatprep.mubr.f32.mxu0 0.0
  %430 = vmatmul.mubr.f32.gmra.mrb[0].mxu0 %v178
  %v431 = vpop.f32.mrb[0].mxu0
  %v432 = vadd.f32 %v355, %v431
  %v433 = vpop.f32.mrb[0].mxu0
  %v434 = vadd.f32 %v357, %v433
  %435 = vdwg.mxu0
  %v436 = vadd.f32 %v426, %v261
  %v437 = vadd.f32 %v428, %v265
  %v438 = vadd.f32 %v432, %v261
  %v439 = vadd.f32 %v434, %v265
  %v440 = vtanh.pop %v436
  %v441 = vtanh.pop %v437
  %v442 = vtanh.pop %v438
  %v443 = vtanh.pop %v439
  %s444 = scalar_lea.vmem %s3, 32
  %445 = vst [vmem:[%s444] sm:$0xff] %v440
  %446 = vst.msk [vmem:[%s444 + $0x8] sm:$0xff] %vm277, %v441
  %447 = vst [vmem:[%s444 + $0x10] sm:$0x1] %v442
  %448 = vst.msk [vmem:[%s444 + $0x18] sm:$0x1] %vm280, %v443
  %449 = vmatprep.subr.mxu0 %v83
  %450 = vmatpush1.msra.mxu0 %v82
  %451 = vmatprep.subr.mxu0 %v85
  %452 = vmatpush1.msra.mxu0 %v84
  %453 = vmatprep.subr.mxu0 %v87
  %454 = vmatpush1.msra.mxu0 %v86
  %455 = vmatprep.subr.mxu0 0.0
  %456 = vmatpush1.msra.mxu0 0.0
  %457 = vmatprep.subr.mxu0 0.0
  %458 = vmatpush1.msra.mxu0 0.0
  %459 = vmatprep.subr.mxu0 0.0
  %460 = vmatpush1.msra.mxu0 0.0
  %461 = vmatprep.subr.mxu0 0.0
  %462 = vmatpush1.msra.mxu0 0.0
  %463 = vmatprep.subr.mxu0 0.0
  %464 = vmatpush1.msra.mxu0 0.0
  %465 = vmatprep.subr.mxu0 0.0
  %466 = vmatpush1.msra.mxu0 0.0
  %467 = vmatprep.subr.mxu0 0.0
  %468 = vmatpush1.msra.mxu0 0.0
  %469 = vmatprep.subr.mxu0 0.0
  %470 = vmatpush1.msra.mxu0 0.0
  %471 = vmatprep.subr.mxu0 0.0
  %472 = vmatpush1.msra.mxu0 0.0
  %473 = vmatprep.subr.mxu0 0.0
  %474 = vmatpush1.msra.mxu0 0.0
  %475 = vmatprep.subr.mxu0 0.0
  %476 = vmatpush1.msra.mxu0 0.0
  %477 = vmatprep.subr.mxu0 0.0
  %478 = vmatpush1.msra.mxu0 0.0
  %479 = vmatprep.subr.mxu0 0.0
  %480 = vmatpush1.msra.mxu0 0.0
  %481 = vmatprep.subr.mxu0 0.0
  %482 = vmatpush1.msra.mxu0 0.0
  %483 = vmatprep.subr.mxu0 0.0
  %484 = vmatpush1.msra.mxu0 0.0
  %485 = vmatprep.subr.mxu0 0.0
  %486 = vmatpush1.msra.mxu0 0.0
  %487 = vmatprep.subr.mxu0 0.0
  %488 = vmatpush1.msra.mxu0 0.0
  %489 = vmatprep.subr.mxu0 0.0
  %490 = vmatpush1.msra.mxu0 0.0
  %491 = vmatprep.subr.mxu0 0.0
  %492 = vmatpush1.msra.mxu0 0.0
  %493 = vmatprep.subr.mxu0 0.0
  %494 = vmatpush1.msra.mxu0 0.0
  %495 = vmatprep.subr.mxu0 0.0
  %496 = vmatpush1.msra.mxu0 0.0
  %497 = vmatprep.subr.mxu0 0.0
  %498 = vmatpush1.msra.mxu0 0.0
  %499 = vmatprep.subr.mxu0 0.0
  %500 = vmatpush1.msra.mxu0 0.0
  %501 = vmatprep.subr.mxu0 0.0
  %502 = vmatpush1.msra.mxu0 0.0
  %503 = vmatprep.subr.mxu0 0.0
  %504 = vmatpush1.msra.mxu0 0.0
  %505 = vmatprep.subr.mxu0 0.0
  %506 = vmatpush1.msra.mxu0 0.0
  %507 = vmatprep.subr.mxu0 0.0
  %508 = vmatpush1.msra.mxu0 0.0
  %509 = vmatprep.subr.mxu0 0.0
  %510 = vmatpush1.msra.mxu0 0.0
  %511 = vmatprep.subr.mxu0 0.0
  %512 = vmatpush1.msra.mxu0 0.0
  %513 = vmatprep.mubr.f32.mxu0 0.0
  %514 = vmatmul.mubr.f32.gmra.mrb[0].mxu0 %v176
  %v515 = vpop.f32.mrb[0].mxu0
  %v516 = vadd.f32 %v261, %v515
  %v517 = vpop.f32.mrb[0].mxu0
  %v518 = vadd.f32 %v265, %v517
  %519 = vmatprep.mubr.f32.mxu0 0.0
  %520 = vmatmul.mubr.f32.gmra.mrb[0].mxu0 %v178
  %v521 = vpop.f32.mrb[0].mxu0
  %v522 = vadd.f32 %v261, %v521
  %v523 = vpop.f32.mrb[0].mxu0
  %v524 = vadd.f32 %v265, %v523
  %525 = vdwg.mxu0
  %v526 = vtanh.pop %v516
  %v527 = vtanh.pop %v518
  %v528 = vtanh.pop %v522
  %v529 = vtanh.pop %v524
  %s530 = scalar_lea.vmem %s3, 64
  %531 = vst [vmem:[%s530] sm:$0xff] %v526
  %532 = vst.msk [vmem:[%s530 + $0x8] sm:$0xff] %vm277, %v527
  %533 = vst [vmem:[%s530 + $0x10] sm:$0x1] %v528
  %534 = vst.msk [vmem:[%s530 + $0x18] sm:$0x1] %vm280, %v529
  %v536 = vsel %vm88, %v50, 0
  %v539 = vsel %vm88, %v52, 0
  %541 = vmatprep.subr.mxu0 %v62
  %542 = vmatpush1.msra.mxu0 %v61
  %543 = vmatprep.subr.mxu0 %v64
  %544 = vmatpush1.msra.mxu0 %v63
  %545 = vmatprep.subr.mxu0 %v66
  %546 = vmatpush1.msra.mxu0 %v65
  %547 = vmatprep.subr.mxu0 0.0
  %548 = vmatpush1.msra.mxu0 0.0
  %549 = vmatprep.subr.mxu0 0.0
  %550 = vmatpush1.msra.mxu0 0.0
  %551 = vmatprep.subr.mxu0 0.0
  %552 = vmatpush1.msra.mxu0 0.0
  %553 = vmatprep.subr.mxu0 0.0
  %554 = vmatpush1.msra.mxu0 0.0
  %555 = vmatprep.subr.mxu0 0.0
  %556 = vmatpush1.msra.mxu0 0.0
  %557 = vmatprep.subr.mxu0 0.0
  %558 = vmatpush1.msra.mxu0 0.0
  %559 = vmatprep.subr.mxu0 0.0
  %560 = vmatpush1.msra.mxu0 0.0
  %561 = vmatprep.subr.mxu0 0.0
  %562 = vmatpush1.msra.mxu0 0.0
  %563 = vmatprep.subr.mxu0 0.0
  %564 = vmatpush1.msra.mxu0 0.0
  %565 = vmatprep.subr.mxu0 0.0
  %566 = vmatpush1.msra.mxu0 0.0
  %567 = vmatprep.subr.mxu0 0.0
  %568 = vmatpush1.msra.mxu0 0.0
  %569 = vmatprep.subr.mxu0 0.0
  %570 = vmatpush1.msra.mxu0 0.0
  %571 = vmatprep.subr.mxu0 0.0
  %572 = vmatpush1.msra.mxu0 0.0
  %573 = vmatprep.subr.mxu0 0.0
  %574 = vmatpush1.msra.mxu0 0.0
  %575 = vmatprep.subr.mxu0 0.0
  %576 = vmatpush1.msra.mxu0 0.0
  %577 = vmatprep.subr.mxu0 0.0
  %578 = vmatpush1.msra.mxu0 0.0
  %579 = vmatprep.subr.mxu0 0.0
  %580 = vmatpush1.msra.mxu0 0.0
  %581 = vmatprep.subr.mxu0 0.0
  %582 = vmatpush1.msra.mxu0 0.0
  %583 = vmatprep.subr.mxu0 0.0
  %584 = vmatpush1.msra.mxu0 0.0
  %585 = vmatprep.subr.mxu0 0.0
  %586 = vmatpush1.msra.mxu0 0.0
  %587 = vmatprep.subr.mxu0 0.0
  %588 = vmatpush1.msra.mxu0 0.0
  %589 = vmatprep.subr.mxu0 0.0
  %590 = vmatpush1.msra.mxu0 0.0
  %591 = vmatprep.subr.mxu0 0.0
  %592 = vmatpush1.msra.mxu0 0.0
  %593 = vmatprep.subr.mxu0 0.0
  %594 = vmatpush1.msra.mxu0 0.0
  %595 = vmatprep.subr.mxu0 0.0
  %596 = vmatpush1.msra.mxu0 0.0
  %597 = vmatprep.subr.mxu0 0.0
  %598 = vmatpush1.msra.mxu0 0.0
  %599 = vmatprep.subr.mxu0 0.0
  %600 = vmatpush1.msra.mxu0 0.0
  %601 = vmatprep.subr.mxu0 0.0
  %602 = vmatpush1.msra.mxu0 0.0
  %603 = vmatprep.subr.mxu0 0.0
  %604 = vmatpush1.msra.mxu0 0.0
  %605 = vmatprep.mubr.f32.mxu0 0.0
  %606 = vmatmul.mubr.f32.gmra.mrb[0].mxu0 %v536
  %v607 = vpop.f32.mrb[0].mxu0
  %v608 = vadd.f32 0.0, %v607
  %v609 = vpop.f32.mrb[0].mxu0
  %v610 = vadd.f32 0.0, %v609
  %611 = vmatprep.mubr.f32.mxu0 0.0
  %612 = vmatmul.mubr.f32.gmra.mrb[0].mxu0 %v539
  %v613 = vpop.f32.mrb[0].mxu0
  %v614 = vadd.f32 0.0, %v613
  %v615 = vpop.f32.mrb[0].mxu0
  %v616 = vadd.f32 0.0, %v615
  %617 = vdwg.mxu0
  %v618 = vrot.slane %v50, 1
  %v619 = vrot.slane %v52, 1
  %v620 = vsel %vm172, %v618, %v619
  %v621 = vsel %vm88, %v620, 0
  %v623 = vsel %vm88, %v619, 0
  %625 = vmatprep.subr.mxu0 %v55
  %626 = vmatpush1.msra.mxu0 %v54
  %627 = vmatprep.subr.mxu0 %v57
  %628 = vmatpush1.msra.mxu0 %v56
  %629 = vmatprep.subr.mxu0 %v59
  %630 = vmatpush1.msra.mxu0 %v58
  %631 = vmatprep.subr.mxu0 0.0
  %632 = vmatpush1.msra.mxu0 0.0
  %633 = vmatprep.subr.mxu0 0.0
  %634 = vmatpush1.msra.mxu0 0.0
  %635 = vmatprep.subr.mxu0 0.0
  %636 = vmatpush1.msra.mxu0 0.0
  %637 = vmatprep.subr.mxu0 0.0
  %638 = vmatpush1.msra.mxu0 0.0
  %639 = vmatprep.subr.mxu0 0.0
  %640 = vmatpush1.msra.mxu0 0.0
  %641 = vmatprep.subr.mxu0 0.0
  %642 = vmatpush1.msra.mxu0 0.0
  %643 = vmatprep.subr.mxu0 0.0
  %644 = vmatpush1.msra.mxu0 0.0
  %645 = vmatprep.subr.mxu0 0.0
  %646 = vmatpush1.msra.mxu0 0.0
  %647 = vmatprep.subr.mxu0 0.0
  %648 = vmatpush1.msra.mxu0 0.0
  %649 = vmatprep.subr.mxu0 0.0
  %650 = vmatpush1.msra.mxu0 0.0
  %651 = vmatprep.subr.mxu0 0.0
  %652 = vmatpush1.msra.mxu0 0.0
  %653 = vmatprep.subr.mxu0 0.0
  %654 = vmatpush1.msra.mxu0 0.0
  %655 = vmatprep.subr.mxu0 0.0
  %656 = vmatpush1.msra.mxu0 0.0
  %657 = vmatprep.subr.mxu0 0.0
  %658 = vmatpush1.msra.mxu0 0.0
  %659 = vmatprep.subr.mxu0 0.0
  %660 = vmatpush1.msra.mxu0 0.0
  %661 = vmatprep.subr.mxu0 0.0
  %662 = vmatpush1.msra.mxu0 0.0
  %663 = vmatprep.subr.mxu0 0.0
  %664 = vmatpush1.msra.mxu0 0.0
  %665 = vmatprep.subr.mxu0 0.0
  %666 = vmatpush1.msra.mxu0 0.0
  %667 = vmatprep.subr.mxu0 0.0
  %668 = vmatpush1.msra.mxu0 0.0
  %669 = vmatprep.subr.mxu0 0.0
  %670 = vmatpush1.msra.mxu0 0.0
  %671 = vmatprep.subr.mxu0 0.0
  %672 = vmatpush1.msra.mxu0 0.0
  %673 = vmatprep.subr.mxu0 0.0
  %674 = vmatpush1.msra.mxu0 0.0
  %675 = vmatprep.subr.mxu0 0.0
  %676 = vmatpush1.msra.mxu0 0.0
  %677 = vmatprep.subr.mxu0 0.0
  %678 = vmatpush1.msra.mxu0 0.0
  %679 = vmatprep.subr.mxu0 0.0
  %680 = vmatpush1.msra.mxu0 0.0
  %681 = vmatprep.subr.mxu0 0.0
  %682 = vmatpush1.msra.mxu0 0.0
  %683 = vmatprep.subr.mxu0 0.0
  %684 = vmatpush1.msra.mxu0 0.0
  %685 = vmatprep.subr.mxu0 0.0
  %686 = vmatpush1.msra.mxu0 0.0
  %687 = vmatprep.subr.mxu0 0.0
  %688 = vmatpush1.msra.mxu0 0.0
  %689 = vmatprep.mubr.f32.mxu0 0.0
  %690 = vmatmul.mubr.f32.gmra.mrb[0].mxu0 %v621
  %v691 = vpop.f32.mrb[0].mxu0
  %v692 = vadd.f32 %v608, %v691
  %v693 = vpop.f32.mrb[0].mxu0
  %v694 = vadd.f32 %v610, %v693
  %695 = vmatprep.mubr.f32.mxu0 0.0
  %696 = vmatmul.mubr.f32.gmra.mrb[0].mxu0 %v623
  %v697 = vpop.f32.mrb[0].mxu0
  %v698 = vadd.f32 %v614, %v697
  %v699 = vpop.f32.mrb[0].mxu0
  %v700 = vadd.f32 %v616, %v699
  %701 = vdwg.mxu0
  %v702 = vadd.f32 %v692, %v261
  %v703 = vadd.f32 %v694, %v265
  %v704 = vadd.f32 %v698, %v261
  %v705 = vadd.f32 %v700, %v265
  %v706 = vtanh.pop %v702
  %v707 = vtanh.pop %v703
  %v708 = vtanh.pop %v704
  %v709 = vtanh.pop %v705
  %s710 = scalar_lea.vmem %s3, 96
  %711 = vst [vmem:[%s710] sm:$0xff] %v706
  %712 = vst.msk [vmem:[%s710 + $0x8] sm:$0xff] %vm277, %v707
  %713 = vst [vmem:[%s710 + $0x10] sm:$0x1] %v708
  %714 = vst.msk [vmem:[%s710 + $0x18] sm:$0x1] %vm280, %v709
  %715 = vmatprep.subr.mxu0 %v76
  %716 = vmatpush1.msra.mxu0 %v75
  %717 = vmatprep.subr.mxu0 %v78
  %718 = vmatpush1.msra.mxu0 %v77
  %719 = vmatprep.subr.mxu0 %v80
  %720 = vmatpush1.msra.mxu0 %v79
  %721 = vmatprep.subr.mxu0 0.0
  %722 = vmatpush1.msra.mxu0 0.0
  %723 = vmatprep.subr.mxu0 0.0
  %724 = vmatpush1.msra.mxu0 0.0
  %725 = vmatprep.subr.mxu0 0.0
  %726 = vmatpush1.msra.mxu0 0.0
  %727 = vmatprep.subr.mxu0 0.0
  %728 = vmatpush1.msra.mxu0 0.0
  %729 = vmatprep.subr.mxu0 0.0
  %730 = vmatpush1.msra.mxu0 0.0
  %731 = vmatprep.subr.mxu0 0.0
  %732 = vmatpush1.msra.mxu0 0.0
  %733 = vmatprep.subr.mxu0 0.0
  %734 = vmatpush1.msra.mxu0 0.0
  %735 = vmatprep.subr.mxu0 0.0
  %736 = vmatpush1.msra.mxu0 0.0
  %737 = vmatprep.subr.mxu0 0.0
  %738 = vmatpush1.msra.mxu0 0.0
  %739 = vmatprep.subr.mxu0 0.0
  %740 = vmatpush1.msra.mxu0 0.0
  %741 = vmatprep.subr.mxu0 0.0
  %742 = vmatpush1.msra.mxu0 0.0
  %743 = vmatprep.subr.mxu0 0.0
  %744 = vmatpush1.msra.mxu0 0.0
  %745 = vmatprep.subr.mxu0 0.0
  %746 = vmatpush1.msra.mxu0 0.0
  %747 = vmatprep.subr.mxu0 0.0
  %748 = vmatpush1.msra.mxu0 0.0
  %749 = vmatprep.subr.mxu0 0.0
  %750 = vmatpush1.msra.mxu0 0.0
  %751 = vmatprep.subr.mxu0 0.0
  %752 = vmatpush1.msra.mxu0 0.0
  %753 = vmatprep.subr.mxu0 0.0
  %754 = vmatpush1.msra.mxu0 0.0
  %755 = vmatprep.subr.mxu0 0.0
  %756 = vmatpush1.msra.mxu0 0.0
  %757 = vmatprep.subr.mxu0 0.0
  %758 = vmatpush1.msra.mxu0 0.0
  %759 = vmatprep.subr.mxu0 0.0
  %760 = vmatpush1.msra.mxu0 0.0
  %761 = vmatprep.subr.mxu0 0.0
  %762 = vmatpush1.msra.mxu0 0.0
  %763 = vmatprep.subr.mxu0 0.0
  %764 = vmatpush1.msra.mxu0 0.0
  %765 = vmatprep.subr.mxu0 0.0
  %766 = vmatpush1.msra.mxu0 0.0
  %767 = vmatprep.subr.mxu0 0.0
  %768 = vmatpush1.msra.mxu0 0.0
  %769 = vmatprep.subr.mxu0 0.0
  %770 = vmatpush1.msra.mxu0 0.0
  %771 = vmatprep.subr.mxu0 0.0
  %772 = vmatpush1.msra.mxu0 0.0
  %773 = vmatprep.subr.mxu0 0.0
  %774 = vmatpush1.msra.mxu0 0.0
  %775 = vmatprep.subr.mxu0 0.0
  %776 = vmatpush1.msra.mxu0 0.0
  %777 = vmatprep.subr.mxu0 0.0
  %778 = vmatpush1.msra.mxu0 0.0
  %779 = vmatprep.mubr.f32.mxu0 0.0
  %780 = vmatmul.mubr.f32.gmra.mrb[0].mxu0 %v536
  %v781 = vpop.f32.mrb[0].mxu0
  %v782 = vadd.f32 0.0, %v781
  %v783 = vpop.f32.mrb[0].mxu0
  %v784 = vadd.f32 0.0, %v783
  %785 = vmatprep.mubr.f32.mxu0 0.0
  %786 = vmatmul.mubr.f32.gmra.mrb[0].mxu0 %v539
  %v787 = vpop.f32.mrb[0].mxu0
  %v788 = vadd.f32 0.0, %v787
  %v789 = vpop.f32.mrb[0].mxu0
  %v790 = vadd.f32 0.0, %v789
  %791 = vdwg.mxu0
  %792 = vmatprep.subr.mxu0 %v69
  %793 = vmatpush1.msra.mxu0 %v68
  %794 = vmatprep.subr.mxu0 %v71
  %795 = vmatpush1.msra.mxu0 %v70
  %796 = vmatprep.subr.mxu0 %v73
  %797 = vmatpush1.msra.mxu0 %v72
  %798 = vmatprep.subr.mxu0 0.0
  %799 = vmatpush1.msra.mxu0 0.0
  %800 = vmatprep.subr.mxu0 0.0
  %801 = vmatpush1.msra.mxu0 0.0
  %802 = vmatprep.subr.mxu0 0.0
  %803 = vmatpush1.msra.mxu0 0.0
  %804 = vmatprep.subr.mxu0 0.0
  %805 = vmatpush1.msra.mxu0 0.0
  %806 = vmatprep.subr.mxu0 0.0
  %807 = vmatpush1.msra.mxu0 0.0
  %808 = vmatprep.subr.mxu0 0.0
  %809 = vmatpush1.msra.mxu0 0.0
  %810 = vmatprep.subr.mxu0 0.0
  %811 = vmatpush1.msra.mxu0 0.0
  %812 = vmatprep.subr.mxu0 0.0
  %813 = vmatpush1.msra.mxu0 0.0
  %814 = vmatprep.subr.mxu0 0.0
  %815 = vmatpush1.msra.mxu0 0.0
  %816 = vmatprep.subr.mxu0 0.0
  %817 = vmatpush1.msra.mxu0 0.0
  %818 = vmatprep.subr.mxu0 0.0
  %819 = vmatpush1.msra.mxu0 0.0
  %820 = vmatprep.subr.mxu0 0.0
  %821 = vmatpush1.msra.mxu0 0.0
  %822 = vmatprep.subr.mxu0 0.0
  %823 = vmatpush1.msra.mxu0 0.0
  %824 = vmatprep.subr.mxu0 0.0
  %825 = vmatpush1.msra.mxu0 0.0
  %826 = vmatprep.subr.mxu0 0.0
  %827 = vmatpush1.msra.mxu0 0.0
  %828 = vmatprep.subr.mxu0 0.0
  %829 = vmatpush1.msra.mxu0 0.0
  %830 = vmatprep.subr.mxu0 0.0
  %831 = vmatpush1.msra.mxu0 0.0
  %832 = vmatprep.subr.mxu0 0.0
  %833 = vmatpush1.msra.mxu0 0.0
  %834 = vmatprep.subr.mxu0 0.0
  %835 = vmatpush1.msra.mxu0 0.0
  %836 = vmatprep.subr.mxu0 0.0
  %837 = vmatpush1.msra.mxu0 0.0
  %838 = vmatprep.subr.mxu0 0.0
  %839 = vmatpush1.msra.mxu0 0.0
  %840 = vmatprep.subr.mxu0 0.0
  %841 = vmatpush1.msra.mxu0 0.0
  %842 = vmatprep.subr.mxu0 0.0
  %843 = vmatpush1.msra.mxu0 0.0
  %844 = vmatprep.subr.mxu0 0.0
  %845 = vmatpush1.msra.mxu0 0.0
  %846 = vmatprep.subr.mxu0 0.0
  %847 = vmatpush1.msra.mxu0 0.0
  %848 = vmatprep.subr.mxu0 0.0
  %849 = vmatpush1.msra.mxu0 0.0
  %850 = vmatprep.subr.mxu0 0.0
  %851 = vmatpush1.msra.mxu0 0.0
  %852 = vmatprep.subr.mxu0 0.0
  %853 = vmatpush1.msra.mxu0 0.0
  %854 = vmatprep.subr.mxu0 0.0
  %855 = vmatpush1.msra.mxu0 0.0
  %856 = vmatprep.mubr.f32.mxu0 0.0
  %857 = vmatmul.mubr.f32.gmra.mrb[0].mxu0 %v621
  %v858 = vpop.f32.mrb[0].mxu0
  %v859 = vadd.f32 %v782, %v858
  %v860 = vpop.f32.mrb[0].mxu0
  %v861 = vadd.f32 %v784, %v860
  %862 = vmatprep.mubr.f32.mxu0 0.0
  %863 = vmatmul.mubr.f32.gmra.mrb[0].mxu0 %v623
  %v864 = vpop.f32.mrb[0].mxu0
  %v865 = vadd.f32 %v788, %v864
  %v866 = vpop.f32.mrb[0].mxu0
  %v867 = vadd.f32 %v790, %v866
  %868 = vdwg.mxu0
  %v869 = vadd.f32 %v859, %v261
  %v870 = vadd.f32 %v861, %v265
  %v871 = vadd.f32 %v865, %v261
  %v872 = vadd.f32 %v867, %v265
  %v873 = vtanh.pop %v869
  %v874 = vtanh.pop %v870
  %v875 = vtanh.pop %v871
  %v876 = vtanh.pop %v872
  %s877 = scalar_lea.vmem %s3, 128
  %878 = vst [vmem:[%s877] sm:$0xff] %v873
  %879 = vst.msk [vmem:[%s877 + $0x8] sm:$0xff] %vm277, %v874
  %880 = vst [vmem:[%s877 + $0x10] sm:$0x1] %v875
  %881 = vst.msk [vmem:[%s877 + $0x18] sm:$0x1] %vm280, %v876
  %882 = vmatprep.subr.mxu0 %v83
  %883 = vmatpush1.msra.mxu0 %v82
  %884 = vmatprep.subr.mxu0 %v85
  %885 = vmatpush1.msra.mxu0 %v84
  %886 = vmatprep.subr.mxu0 %v87
  %887 = vmatpush1.msra.mxu0 %v86
  %888 = vmatprep.subr.mxu0 0.0
  %889 = vmatpush1.msra.mxu0 0.0
  %890 = vmatprep.subr.mxu0 0.0
  %891 = vmatpush1.msra.mxu0 0.0
  %892 = vmatprep.subr.mxu0 0.0
  %893 = vmatpush1.msra.mxu0 0.0
  %894 = vmatprep.subr.mxu0 0.0
  %895 = vmatpush1.msra.mxu0 0.0
  %896 = vmatprep.subr.mxu0 0.0
  %897 = vmatpush1.msra.mxu0 0.0
  %898 = vmatprep.subr.mxu0 0.0
  %899 = vmatpush1.msra.mxu0 0.0
  %900 = vmatprep.subr.mxu0 0.0
  %901 = vmatpush1.msra.mxu0 0.0
  %902 = vmatprep.subr.mxu0 0.0
  %903 = vmatpush1.msra.mxu0 0.0
  %904 = vmatprep.subr.mxu0 0.0
  %905 = vmatpush1.msra.mxu0 0.0
  %906 = vmatprep.subr.mxu0 0.0
  %907 = vmatpush1.msra.mxu0 0.0
  %908 = vmatprep.subr.mxu0 0.0
  %909 = vmatpush1.msra.mxu0 0.0
  %910 = vmatprep.subr.mxu0 0.0
  %911 = vmatpush1.msra.mxu0 0.0
  %912 = vmatprep.subr.mxu0 0.0
  %913 = vmatpush1.msra.mxu0 0.0
  %914 = vmatprep.subr.mxu0 0.0
  %915 = vmatpush1.msra.mxu0 0.0
  %916 = vmatprep.subr.mxu0 0.0
  %917 = vmatpush1.msra.mxu0 0.0
  %918 = vmatprep.subr.mxu0 0.0
  %919 = vmatpush1.msra.mxu0 0.0
  %920 = vmatprep.subr.mxu0 0.0
  %921 = vmatpush1.msra.mxu0 0.0
  %922 = vmatprep.subr.mxu0 0.0
  %923 = vmatpush1.msra.mxu0 0.0
  %924 = vmatprep.subr.mxu0 0.0
  %925 = vmatpush1.msra.mxu0 0.0
  %926 = vmatprep.subr.mxu0 0.0
  %927 = vmatpush1.msra.mxu0 0.0
  %928 = vmatprep.subr.mxu0 0.0
  %929 = vmatpush1.msra.mxu0 0.0
  %930 = vmatprep.subr.mxu0 0.0
  %931 = vmatpush1.msra.mxu0 0.0
  %932 = vmatprep.subr.mxu0 0.0
  %933 = vmatpush1.msra.mxu0 0.0
  %934 = vmatprep.subr.mxu0 0.0
  %935 = vmatpush1.msra.mxu0 0.0
  %936 = vmatprep.subr.mxu0 0.0
  %937 = vmatpush1.msra.mxu0 0.0
  %938 = vmatprep.subr.mxu0 0.0
  %939 = vmatpush1.msra.mxu0 0.0
  %940 = vmatprep.subr.mxu0 0.0
  %941 = vmatpush1.msra.mxu0 0.0
  %942 = vmatprep.subr.mxu0 0.0
  %943 = vmatpush1.msra.mxu0 0.0
  %944 = vmatprep.subr.mxu0 0.0
  %945 = vmatpush1.msra.mxu0 0.0
  %946 = vmatprep.mubr.f32.mxu0 0.0
  %947 = vmatmul.mubr.f32.gmra.mrb[0].mxu0 %v621
  %v948 = vpop.f32.mrb[0].mxu0
  %v949 = vadd.f32 %v261, %v948
  %v950 = vpop.f32.mrb[0].mxu0
  %v951 = vadd.f32 %v265, %v950
  %952 = vmatprep.mubr.f32.mxu0 0.0
  %953 = vmatmul.mubr.f32.gmra.mrb[0].mxu0 %v623
  %v954 = vpop.f32.mrb[0].mxu0
  %v955 = vadd.f32 %v261, %v954
  %v956 = vpop.f32.mrb[0].mxu0
  %v957 = vadd.f32 %v265, %v956
  %958 = vdwg.mxu0
  %v959 = vtanh.pop %v949
  %v960 = vtanh.pop %v951
  %v961 = vtanh.pop %v955
  %v962 = vtanh.pop %v957
  %s963 = scalar_lea.vmem %s3, 160
  %964 = vst [vmem:[%s963] sm:$0xff] %v959
  %965 = vst.msk [vmem:[%s963 + $0x8] sm:$0xff] %vm277, %v960
  %966 = vst [vmem:[%s963 + $0x10] sm:$0x1] %v961
  %967 = vst.msk [vmem:[%s963 + $0x18] sm:$0x1] %vm280, %v962
  // Predicated region
  $region14: #{model_forward.1} parent=0 // pred_check
    _
  $region15: #{model_forward.1} parent=0 // pred_check_branch
    %969 = sbr.rel (0) target = $region17
  $region16: #{model_forward.1} parent=0 // pred_region
    _
  $region17: #{model_forward.1} parent=0 // pred_fallthru
    _
  // Predicated region
  $region18: #{model_forward.1} parent=0 // pred_check
    _
  $region19: #{model_forward.1} parent=0 // pred_check_branch
    %971 = sbr.rel (0) target = $region21
  $region20: #{model_forward.1} parent=0 // pred_region
    _
  $region21: #{model_forward.1} parent=0 // pred_fallthru
    _

</llo_original>
